<compile_context>
chip_gen: v7x
topology: tpu7x:2x2x1
jax: 0.10.0
libtpu: 0.0.40
codegen_flags: <defaults>
</compile_context>

<pallas_src>
import math

import jax
import jax.numpy as jnp
from jax.experimental import pallas as pl
from jax.experimental.pallas import tpu as pltpu

_LANES = 128  # vreg lane width


def _sublane_multiple(dtype) -> int:
    # f32 -> 8, bf16/f16 -> 16, int8/fp8 -> 32
    return {4: 8, 2: 16, 1: 32}.get(jnp.dtype(dtype).itemsize, 8)


def _make_kernel(inv_t: float, inv_z: float, deg2rad: float):
    """Kernel with the (non-trainable) scale baked in as Python constants."""

    def _normalize_kernel(x_ref, o_ref):
        # Rebuild the per-lane scale from scalar constants.  Row-major flatten
        # means feature index == lane & 3:
        #   0 -> 1/tscale, 1 -> 1/zscale, 2 & 3 -> pi/180
        lane = jax.lax.broadcasted_iota(jnp.int32, (1, _LANES), 1)
        feat = lane & 3
        scale = jnp.where(
            feat == 0, inv_t, jnp.where(feat == 1, inv_z, deg2rad)
        ).astype(x_ref.dtype)
        # Pure load -> broadcast-mul -> unmasked lane-dense store; DMA-bound.
        o_ref[...] = x_ref[...] * scale

    return _normalize_kernel


def make_scale(tscale: float, zscale: float) -> jax.Array:
    # Reference parameter, mirroring nn.Parameter(..., requires_grad=False).
    return jnp.array(
        [1.0 / tscale, 1.0 / zscale, math.pi / 180.0, math.pi / 180.0],
        dtype=jnp.float32,
    )


def make_normalize_input(
    tscale: float,
    zscale: float,
    *,
    tile_rows: int = 4096,       # 2 MiB / f32 block; safe on v5e/v6e/v7x defaults
    min_kernel_rows: int = 64,   # below 64*128 elements, use the plain-JAX bypass
):
    """Returns forward(x: (B, 4)) -> (B, 4), matching NormalizeInput.forward."""
    inv_t = 1.0 / float(tscale)
    inv_z = 1.0 / float(zscale)
    deg2rad = math.pi / 180.0
    kernel = _make_kernel(inv_t, inv_z, deg2rad)
    scale_vec = jnp.array([inv_t, inv_z, deg2rad, deg2rad], dtype=jnp.float32)

    def _kernel_2d(x2d: jax.Array) -> jax.Array:
        rows = x2d.shape[0]
        dtype = x2d.dtype
        sub = _sublane_multiple(dtype)

        # Tile selection: as large as requested, but keep >= 2 grid steps so the
        # "parallel" axis actually feeds both TensorCores on v7x.
        block_rows = min(tile_rows, rows)
        half = max(sub, (rows // 2) // sub * sub)
        block_rows = max(sub, (min(block_rows, half) // sub) * sub)
        grid = (pl.cdiv(rows, block_rows),)

        # Raise scoped-VMEM limit only when large tiles need it; cap at 48 MiB
        # to stay under v7x's 64 MiB physical VMEM.
        block_bytes = block_rows * _LANES * jnp.dtype(dtype).itemsize
        vmem_needed = 4 * block_bytes + (2 << 20)  # in+out, double-buffered, slack
        vmem_limit = None
        if vmem_needed > (12 << 20):
            vmem_limit = int(min(max(vmem_needed, 16 << 20), 48 << 20))

        return pl.pallas_call(
            kernel,
            out_shape=jax.ShapeDtypeStruct(x2d.shape, dtype),
            grid_spec=pltpu.PrefetchScalarGridSpec(
                num_scalar_prefetch=0,
                grid=grid,
                in_specs=[pl.BlockSpec((block_rows, _LANES), lambda i: (i, 0))],
                out_specs=pl.BlockSpec((block_rows, _LANES), lambda i: (i, 0)),
            ),
            compiler_params=pltpu.CompilerParams(
                dimension_semantics=("parallel",),
                vmem_limit_bytes=vmem_limit,
            ),
        )(x2d)

    def forward(x: jax.Array) -> jax.Array:
        assert x.ndim == 2 and x.shape[-1] == 4, "expected (batch, 4) input"
        B, F = x.shape
        n = B * F
        scale = scale_vec.astype(x.dtype)

        # Small-batch bypass: pallas_call launch overhead would dominate; XLA
        # fuses the single multiply into adjacent ops for free.
        if n < min_kernel_rows * _LANES:
            return x * scale

        if n % _LANES == 0:
            # Zero-copy fast path: row-major flatten to (rows, 128) is a bitcast.
            rows = n // _LANES
            out2d = _kernel_2d(x.reshape(rows, _LANES))
            return out2d.reshape(B, F)

        # Ragged path: kernel on the largest 128-divisible prefix, plain-JAX on
        # the (< 32-row) tail.  The slice/concat touch the main part once each —
        # still cheaper than the old pad + trailing-slice (two full passes).
        # TODO(synk): keep B % 32 == 0 upstream (or fuse this op) to stay on the
        # zero-copy path.
        b_main = (n // _LANES) * _LANES // F
        main = _kernel_2d(x[:b_main].reshape(-1, _LANES)).reshape(b_main, F)
        tail = x[b_main:] * scale
        return jnp.concatenate([main, tail], axis=0)

    return forward


if __name__ == "__main__":
    tscale, zscale = 10.0, 100.0
    normalize_input = make_normalize_input(tscale, zscale)
    scale_ref = make_scale(tscale, zscale)

    key = jax.random.PRNGKey(0)
    k1, k2, k3 = jax.random.split(key, 3)

    # 1) tiny input      -> plain-JAX bypass path
    x_small = jax.random.normal(k1, (16, 4), dtype=jnp.float32)
    # 2) divisible input -> zero-copy Pallas path (rows=256, grid=2)
    x_big = jax.random.normal(k2, (8192, 4), dtype=jnp.float32)
    # 3) ragged input    -> Pallas main + plain-JAX tail
    x_ragged = jax.random.normal(k3, (8200, 4), dtype=jnp.float32)

    for x in (x_small, x_big, x_ragged):
        out = normalize_input(x)
        jax.block_until_ready(out)
        ref = x * scale_ref[None, :].astype(x.dtype)
        assert out.shape == x.shape and out.dtype == x.dtype
        assert jnp.allclose(out, ref, atol=1e-6, rtol=1e-6)

    print("KERNEL_OK")
</pallas_src>

<mosaic_0001>
module attributes {stable_mosaic.version = 11 : i64} {
  func.func @_normalize_kernel(%arg0: i32, %arg1: memref<128x128xf32, #tpu.memory_space<vmem>>, %arg2: memref<128x128xf32, #tpu.memory_space<vmem>>) attributes {dimension_semantics = [#tpu.dimension_semantics<parallel>], iteration_bounds = array<i64: 2>, scalar_prefetch = 0 : i64, scratch_operands = 0 : i64, tpu.core_type = #tpu.core_type<tc>, window_params = [{transform_indices = @transform_0, window_bounds = array<i64: 128, 128>}, {transform_indices = @transform_1, window_bounds = array<i64: 128, 128>}]} {
    %0 = tpu.iota {dimensions = array<i32: 1>} : vector<1x128xi32>
    %c3_i32 = arith.constant 3 : i32
    %1 = vector.broadcast %c3_i32 : i32 to vector<1x128xi32>
    %2 = arith.andi %0, %1 : vector<1x128xi32>
    %c0_i32 = arith.constant 0 : i32
    %3 = vector.broadcast %c0_i32 : i32 to vector<1x128xi32>
    %4 = arith.cmpi eq, %2, %3 : vector<1x128xi32>
    %c1_i32 = arith.constant 1 : i32
    %5 = vector.broadcast %c1_i32 : i32 to vector<1x128xi32>
    %6 = arith.cmpi eq, %2, %5 : vector<1x128xi32>
    %cst = arith.constant 0.00999999977 : f32
    %cst_0 = arith.constant 0.0174532924 : f32
    %7 = vector.broadcast %cst : f32 to vector<1x128xf32>
    %8 = vector.broadcast %cst_0 : f32 to vector<1x128xf32>
    %9 = arith.select %6, %7, %8 : vector<1x128xi1>, vector<1x128xf32>
    %cst_1 = arith.constant 1.000000e-01 : f32
    %10 = vector.broadcast %cst_1 : f32 to vector<1x128xf32>
    %11 = arith.select %4, %10, %9 : vector<1x128xi1>, vector<1x128xf32>
    %c0 = arith.constant 0 : index
    %c0_2 = arith.constant 0 : index
    %12 = vector.load %arg1[%c0, %c0_2] : memref<128x128xf32, #tpu.memory_space<vmem>>, vector<128x128xf32>
    %13 = vector.broadcast %11 : vector<1x128xf32> to vector<128x128xf32>
    %14 = arith.mulf %12, %13 : vector<128x128xf32>
    %c0_3 = arith.constant 0 : index
    %c0_4 = arith.constant 0 : index
    %15 = vector.load %arg2[%c0_3, %c0_4] : memref<128x128xf32, #tpu.memory_space<vmem>>, vector<128x128xf32>
    tpu.vector_store %arg2[%c0_3, %c0_4], %14 {strides = array<i32>} : memref<128x128xf32, #tpu.memory_space<vmem>>, vector<128x128xf32>,
    return
  }
  func.func @transform_0(%arg0: i32) -> (i32, i32) {
    %c0_i32 = arith.constant 0 : i32
    %c0_i32_0 = arith.constant 0 : i32
    return %arg0, %c0_i32 : i32, i32
  }
  func.func @transform_1(%arg0: i32) -> (i32, i32) {
    %c0_i32 = arith.constant 0 : i32
    %c0_i32_0 = arith.constant 0 : i32
    return %arg0, %c0_i32 : i32, i32
  }
}

</mosaic_0001>

<llo_original>
// kernel: tpu_custom_call.1
$region0: #{tpu_custom_call.1}
  #allocation0 [shape = 'u32[]', space=smem, size = 0x4, offset = 0x4, fixed_abs, tag = 'smem constant byte address 0x4 - core index']
  #allocation1 [shape = 'u32[144,128]{1,0:T(1,128)}', space=vmem, size = 0x12000, scoped, tag = 'internal scratch']
  %s0 = inlined_call_operand.hbm [shape: f32[256,128], index: 0, kind: input, shape index: {}]
  %s1 = inlined_call_operand.hbm [shape: f32[256,128], index: 1, kind: output, shape index: {}]
  %s2 = sld [smem:[#allocation0]]
  $region41: #{tpu_custom_call.1} parent=0
    _
  %s4 = ssub.s32 1, %s2
  %s5 = scalar_select 0, %s4, %s2
  $region1: #{tpu_custom_call.1} parent=0
    #allocation2 [shape = 'u8[131072]{0}', space=vmem, size = 0x20000, scoped, tag = 'input window, operand 0']
    #allocation3 [shape = 's32[2]{0}', space=sflag, size = 0x8, scoped, tag = 'scoped memory for tpu_custom_call.1']
    #allocation4 [shape = 's32[2]{0}', space=sflag, size = 0x8, scoped, tag = 'scoped memory for tpu_custom_call.1']
    #allocation5 [shape = 'u8[131072]{0}', space=vmem, size = 0x20000, scoped, tag = 'output window, operand 0']
    %6 = vsyncpa [#allocation3], 0
    %s7 = scalar_lea.sflag [#allocation3], 1
    %8 = vsyncpa %s7, 0
    %9 = vsyncpa [#allocation4], 0
    %s10 = scalar_lea.sflag [#allocation4], 1
    %11 = vsyncpa %s10, 0
    loop: start=0, step=1, limit=4
    $region2: #{tpu_custom_call.1} parent=1 // loop_pre_header
      _
    $region3: #{tpu_custom_call.1} parent=1 // loop_header
      %s13 = sphi 0, %s17
      %p14 = scmp.ge.s32.totalorder %s13, 4
      %s23 = sphi 0, %s25
      %s26 = sphi 0, %s23
      %s27 = sphi 0, %s26
      %s43 = sphi 0, %s27
      %s49 = sphi 0, %s51
      %s52 = sphi 0, %s49
      %s53 = sphi 0, %s52
      %s69 = sphi 0, %s53
    $region4: #{tpu_custom_call.1} parent=1 // loop_header_branch
      %16 = sbr.rel (%p14) target = $region8
    $region5: #{tpu_custom_call.1} parent=1 // loop_body
      %s18 = ssub.s32 %s13, 1
      %s19 = ssub.s32 %s13, 2
      %s20 = sadd.s32 %s13, 1
      %s21 = ssub.s32 %s13, %s20
      %p22 = scmp.eq.s32.totalorder %s21, 0
      %s24 = sadd.s32 %s23, 1
      %s25 = scalar_select %p22, %s23, %s24
      %p28 = pneg %p22
      %p29 = scmp.eq.s32.totalorder %s13, 1
      %p30 = por %p28, %p29
      %p31 = scmp.ne.s32.totalorder %s23, %s26
      %p32 = scmp.eq.s32.totalorder %s13, 0
      %p33 = por %p31, %p32
      %p34 = scmp.ne.s32.totalorder %s23, %s26
      %p35 = scmp.eq.s32.totalorder %s18, 1
      %p36 = por %p34, %p35
      %p37 = scmp.ne.s32.totalorder %s26, %s27
      %p38 = scmp.eq.s32.totalorder %s18, 0
      %p39 = por %p37, %p38
      %p40 = scmp.ne.s32.totalorder %s26, %s27
      %p41 = scmp.eq.s32.totalorder %s19, 1
      %p42 = por %p40, %p41
      %p44 = scmp.ne.s32.totalorder %s27, %s43
      %p45 = scmp.eq.s32.totalorder %s19, 0
      %p46 = por %p44, %p45
      %s47 = ssub.s32 %s13, %s20
      %p48 = scmp.eq.s32.totalorder %s47, 0
      %s50 = sadd.s32 %s49, 1
      %s51 = scalar_select %p48, %s49, %s50
      %p54 = pneg %p48
      %p55 = scmp.eq.s32.totalorder %s13, 1
      %p56 = por %p54, %p55
      %p57 = scmp.ne.s32.totalorder %s49, %s52
      %p58 = scmp.eq.s32.totalorder %s13, 0
      %p59 = por %p57, %p58
      %p60 = scmp.ne.s32.totalorder %s49, %s52
      %p61 = scmp.eq.s32.totalorder %s18, 1
      %p62 = por %p60, %p61
      %p63 = scmp.ne.s32.totalorder %s52, %s53
      %p64 = scmp.eq.s32.totalorder %s18, 0
      %p65 = por %p63, %p64
      %p66 = scmp.ne.s32.totalorder %s52, %s53
      %p67 = scmp.eq.s32.totalorder %s19, 1
      %p68 = por %p66, %p67
      %p70 = scmp.ne.s32.totalorder %s53, %s69
      %p71 = scmp.eq.s32.totalorder %s19, 0
      %p72 = por %p70, %p71
      %p73 = scmp.le.s32.totalorder 1, %s13
      %p74 = scmp.lt.s32.totalorder %s13, 3
      %p75 = pnand %p73, %p74
      %p76 = pneg %p75
      // Predicated region
      $region9: #{tpu_custom_call.1} parent=5 // pred_check
        _
      $region10: #{tpu_custom_call.1} parent=5 // pred_check_branch
        %78 = sbr.rel (%p75) target = $region12
      $region11: #{tpu_custom_call.1} parent=5 // pred_region
        %s79 = ssub.s32 %s13, 1
      $region12: #{tpu_custom_call.1} parent=5 // pred_fallthru
        _
      %p80 = scmp.lt.s32.totalorder %s13, 2
      // Predicated region
      $region13: #{tpu_custom_call.1} parent=5 // pred_check
        %p81 = pneg %p80
      $region14: #{tpu_custom_call.1} parent=5 // pred_check_branch
        %83 = sbr.rel (%p81) target = $region16
      $region15: #{tpu_custom_call.1} parent=5 // pred_region
        // Predicated region
        $region17: #{tpu_custom_call.1} parent=15 // pred_check
          %p84 = pneg %p33
        $region18: #{tpu_custom_call.1} parent=15 // pred_check_branch
          %86 = sbr.rel (%p84) target = $region20
        $region19: #{tpu_custom_call.1} parent=15 // pred_region
          %s87 = sand.u32 %s23, 1
          %s88 = scalar_lea.sflag [#allocation3], %s87
          %s89 = sand.u32 %s23, 1
          %s90 = smul.addr %s89, 128
          %s91 = scalar_lea.vmem [#allocation2], %s90
          %s92 = smul.u32 16, %s13
          %s94 = ssub.s32 2048, 2048
          %95 = vsyncadd %s88, %s94
          %s96 = smul.addr %s92, 128
          %s97 = scalar_lea.hbm %s0, %s96
          %s98 = sshll.u32 %s91, 4
          %s99 = int_to_ptr.vmem [resolvable:$true] %s98
          %104 = dma.hbm_to_vmem [thread:$0]  %s97, 2048, %s99, %s88, 128, 128, 8
        $region20: #{tpu_custom_call.1} parent=15 // pred_fallthru
          _
      $region16: #{tpu_custom_call.1} parent=5 // pred_fallthru
        _
      %p105 = scmp.le.s32.totalorder 1, %s13
      %p106 = scmp.lt.s32.totalorder %s13, 3
      %p107 = pnand %p105, %p106
      %p108 = pneg %p107
      // Predicated region
      $region21: #{tpu_custom_call.1} parent=5 // pred_check
        _
      $region22: #{tpu_custom_call.1} parent=5 // pred_check_branch
        %110 = sbr.rel (%p107) target = $region24
      $region23: #{tpu_custom_call.1} parent=5 // pred_region
        %s111 = ssub.s32 %s13, 1
        %s112 = sand.u32 %s26, 1
        %s113 = scalar_lea.sflag [#allocation3], %s112
        %s114 = sand.u32 %s26, 1
        %s115 = smul.addr %s114, 128
        %s116 = scalar_lea.vmem [#allocation2], %s115
        // Predicated region
        $region25: #{tpu_custom_call.1} parent=23 // pred_check
          %p117 = pneg %p39
        $region26: #{tpu_custom_call.1} parent=23 // pred_check_branch
          %119 = sbr.rel (%p117) target = $region28
        $region27: #{tpu_custom_call.1} parent=23 // pred_region
          %120 = dma.done %s113, 2048
        $region28: #{tpu_custom_call.1} parent=23 // pred_fallthru
          _
        %s121 = sand.u32 %s26, 1
        %s122 = scalar_lea.sflag [#allocation3], %s121
        %s123 = sand.u32 %s26, 1
        %s124 = smul.addr %s123, 128
        %s125 = scalar_lea.vmem [#allocation2], %s124
        %p126 = pneg %p39
        %p127 = pneg %p36
        %p128 = pneg %p65
        %p129 = pneg %p62
        %s130 = sand.u32 %s52, 1
        %s131 = scalar_lea.sflag [#allocation4], %s130
        %s132 = sand.u32 %s52, 1
        %s133 = smul.addr %s132, 128
        %s134 = scalar_lea.vmem [#allocation5], %s133
        %s135 = smul.u32 16, %s18
        %s136 = smul.u32 16, %s18
        %v137 = vlaneseq
        %v138 = vand.u32 %v137, 127
        %v139 = vand.u32 %v138, 3
        %vm140 = vcmp.eq.s32.totalorder %v139, 0
        %vm141 = vcmp.eq.s32.totalorder %v139, 1
        %v142 = vsel %vm141, 0.01, 0.017453292
        %v143 = vsel %vm140, 0.1, %v142
        %v144 = vld [vmem:[%s116] sm:$0xff]
        %v145 = vld [vmem:[%s116 + $0x8] sm:$0xff]
        %v146 = vld [vmem:[%s116 + $0x10] sm:$0xff]
        %v147 = vld [vmem:[%s116 + $0x18] sm:$0xff]
        %v148 = vld [vmem:[%s116 + $0x20] sm:$0xff]
        %v149 = vld [vmem:[%s116 + $0x28] sm:$0xff]
        %v150 = vld [vmem:[%s116 + $0x30] sm:$0xff]
        %v151 = vld [vmem:[%s116 + $0x38] sm:$0xff]
        %v152 = vld [vmem:[%s116 + $0x40] sm:$0xff]
        %v153 = vld [vmem:[%s116 + $0x48] sm:$0xff]
        %v154 = vld [vmem:[%s116 + $0x50] sm:$0xff]
        %v155 = vld [vmem:[%s116 + $0x58] sm:$0xff]
        %v156 = vld [vmem:[%s116 + $0x60] sm:$0xff]
        %v157 = vld [vmem:[%s116 + $0x68] sm:$0xff]
        %v158 = vld [vmem:[%s116 + $0x70] sm:$0xff]
        %v159 = vld [vmem:[%s116 + $0x78] sm:$0xff]
        %v160 = vmul.f32 %v144, %v143
        %v161 = vmul.f32 %v145, %v143
        %v162 = vmul.f32 %v146, %v143
        %v163 = vmul.f32 %v147, %v143
        %v164 = vmul.f32 %v148, %v143
        %v165 = vmul.f32 %v149, %v143
        %v166 = vmul.f32 %v150, %v143
        %v167 = vmul.f32 %v151, %v143
        %v168 = vmul.f32 %v152, %v143
        %v169 = vmul.f32 %v153, %v143
        %v170 = vmul.f32 %v154, %v143
        %v171 = vmul.f32 %v155, %v143
        %v172 = vmul.f32 %v156, %v143
        %v173 = vmul.f32 %v157, %v143
        %v174 = vmul.f32 %v158, %v143
        %v175 = vmul.f32 %v159, %v143
        %176 = vst [vmem:[%s134] sm:$0xff] %v160
        %177 = vst [vmem:[%s134 + $0x8] sm:$0xff] %v161
        %178 = vst [vmem:[%s134 + $0x10] sm:$0xff] %v162
        %179 = vst [vmem:[%s134 + $0x18] sm:$0xff] %v163
        %180 = vst [vmem:[%s134 + $0x20] sm:$0xff] %v164
        %181 = vst [vmem:[%s134 + $0x28] sm:$0xff] %v165
        %182 = vst [vmem:[%s134 + $0x30] sm:$0xff] %v166
        %183 = vst [vmem:[%s134 + $0x38] sm:$0xff] %v167
        %184 = vst [vmem:[%s134 + $0x40] sm:$0xff] %v168
        %185 = vst [vmem:[%s134 + $0x48] sm:$0xff] %v169
        %186 = vst [vmem:[%s134 + $0x50] sm:$0xff] %v170
        %187 = vst [vmem:[%s134 + $0x58] sm:$0xff] %v171
        %188 = vst [vmem:[%s134 + $0x60] sm:$0xff] %v172
        %189 = vst [vmem:[%s134 + $0x68] sm:$0xff] %v173
        %190 = vst [vmem:[%s134 + $0x70] sm:$0xff] %v174
        %191 = vst [vmem:[%s134 + $0x78] sm:$0xff] %v175
        %s192 = sand.u32 %s52, 1
        %s193 = scalar_lea.sflag [#allocation4], %s192
        %s194 = sand.u32 %s52, 1
        %s195 = smul.addr %s194, 128
        %s196 = scalar_lea.vmem [#allocation5], %s195
        // Predicated region
        $region29: #{tpu_custom_call.1} parent=23 // pred_check
          %p197 = pneg %p62
        $region30: #{tpu_custom_call.1} parent=23 // pred_check_branch
          %199 = sbr.rel (%p197) target = $region32
        $region31: #{tpu_custom_call.1} parent=23 // pred_region
          %s200 = smul.u32 16, %s18
          %s202 = ssub.s32 2048, 2048
          %203 = vsyncadd %s193, %s202
          %s204 = smul.addr %s200, 128
          %s205 = scalar_lea.hbm %s1, %s204
          %s206 = sshll.u32 %s196, 4
          %s207 = int_to_ptr.vmem [resolvable:$true] %s206
          %212 = dma.vmem_to_hbm [thread:$0]  %s207, 2048, %s205, %s193, 128, 128, 8
        $region32: #{tpu_custom_call.1} parent=23 // pred_fallthru
          _
      $region24: #{tpu_custom_call.1} parent=5 // pred_fallthru
        _
      %p213 = scmp.le.s32.totalorder 2, %s13
      // Predicated region
      $region33: #{tpu_custom_call.1} parent=5 // pred_check
        %p214 = pneg %p213
      $region34: #{tpu_custom_call.1} parent=5 // pred_check_branch
        %216 = sbr.rel (%p214) target = $region36
      $region35: #{tpu_custom_call.1} parent=5 // pred_region
        %s217 = ssub.s32 %s13, 2
        // Predicated region
        $region37: #{tpu_custom_call.1} parent=35 // pred_check
          %p218 = pneg %p68
        $region38: #{tpu_custom_call.1} parent=35 // pred_check_branch
          %220 = sbr.rel (%p218) target = $region40
        $region39: #{tpu_custom_call.1} parent=35 // pred_region
          %s221 = sand.u32 %s53, 1
          %s222 = scalar_lea.sflag [#allocation4], %s221
          %s223 = sand.u32 %s53, 1
          %s224 = smul.addr %s223, 128
          %s225 = scalar_lea.vmem [#allocation5], %s224
          %226 = dma.done %s222, 2048
        $region40: #{tpu_custom_call.1} parent=35 // pred_fallthru
          _
      $region36: #{tpu_custom_call.1} parent=5 // pred_fallthru
        _
    $region6: #{tpu_custom_call.1} parent=1 // loop_footer
      %s17 = sadd.s32 1, %s13
    $region7: #{tpu_custom_call.1} parent=1 // loop_footer_branch
      %12 = sbr.rel target = $region3
    $region8: #{tpu_custom_call.1} parent=1 // loop_exit
      _
    %227 = vsyncpa [#allocation3], 1
    %s228 = scalar_lea.sflag [#allocation3], 1
    %229 = vsyncpa %s228, 1
    %230 = vsyncpa [#allocation4], 1
    %s231 = scalar_lea.sflag [#allocation4], 1
    %232 = vsyncpa %s231, 1

</llo_original>
